<compile_context>
chip_gen: v7x
topology: tpu7x:2x2x1
jax: 0.10.0
libtpu: 0.0.40
codegen_flags: <defaults>
</compile_context>

<pallas_src>
import functools

import jax
import jax.numpy as jnp
from jax.experimental import pallas as pl
from jax.experimental.pallas import tpu as pltpu

EPS = 1e-6
_MIB = 1024 * 1024


def _rmsnorm_kernel(x_ref, w_ref, o_ref, *, inv_dim):
    # Pass 1: mean-square in f32. This f32 copy of x dies at the reduce.
    xf = x_ref[...].astype(jnp.float32)                       # (block_rows, dim)
    ms = jnp.sum(xf * xf, axis=-1, keepdims=True) * inv_dim   # XLU row reduce
    inv = jax.lax.rsqrt(ms + EPS)                              # EUP rsqrt
    # Pass 2: re-read + re-cast x so the pass-1 f32 tile isn't live here
    # (halves peak f32 temporaries for bf16/int8 inputs). Weight is already
    # f32 (cast once in the wrapper). Matches torch: scale in f32, then cast.
    o_ref[...] = (x_ref[...].astype(jnp.float32) * inv * w_ref[...]).astype(o_ref.dtype)


def _sublane_multiple(dtype):
    # Native sublane packing: 8 rows for 4-byte, 16 for 2-byte, 32 for 1-byte.
    itemsize = jnp.dtype(dtype).itemsize
    return max(8, 32 // max(itemsize, 1))


def _chip_config():
    """Per-generation (vmem_ceiling_bytes, tile_target_bytes, is_v7x)."""
    kind = ""
    try:
        kind = jax.devices()[0].device_kind.lower()
    except Exception:
        pass
    cap = None
    try:
        info = pltpu.get_tpu_info()
        cap = getattr(info, "vmem_capacity_bytes", None)
    except Exception:
        pass

    if "v7" in kind:
        # v7x: 64 MiB per TensorCore (the query may report chip totals) ->
        # clamp the explicit limit to 56 MiB/TC and use moderate tiles.
        return 56 * _MIB, 4 * _MIB, True
    if "v5e" in kind or "v5 lite" in kind or "v5lite" in kind:
        # v5e: ~0.8 TB/s HBM, 1-2 MiB tiles already amortize step overhead;
        # keep VMEM pressure low (leaves room for f32 upcast temporaries).
        return 64 * _MIB, 2 * _MIB, False
    # v6e / v4 / v5p: 128 MiB VMEM per TC -> allow large pipelined tiles.
    cap_tc = int(cap) if (cap and 32 * _MIB <= cap <= 256 * _MIB) else 128 * _MIB
    ceiling = max(16 * _MIB, min(cap_tc - 32 * _MIB, 96 * _MIB))
    return ceiling, 8 * _MIB, False


def _bytes_needed(block_rows, dim, itemsize):
    pipelined = 4 * block_rows * dim * itemsize   # double-buffered (x + out) tiles
    f32_temp = 2 * block_rows * dim * 4           # in-kernel f32 cast / product temps
    weight = dim * 4
    return pipelined + f32_temp + weight


def _pick_block_rows(rows, dim, dtype, tile_target_bytes, budget_bytes, is_v7x):
    sub = _sublane_multiple(dtype)
    itemsize = jnp.dtype(dtype).itemsize
    # Byte-targeted tile: block_rows so one x tile is ~tile_target_bytes.
    br = tile_target_bytes // max(dim * itemsize, 1)
    # Shrink until pipelined buffers + f32 temporaries fit the VMEM budget.
    while br > sub and _bytes_needed(br, dim, itemsize) > budget_bytes:
        br //= 2
    br = max(sub, (br // sub) * sub)
    if is_v7x and rows > 2 * sub:
        # Keep >= 2 grid steps so the "parallel" axis feeds both TensorCores.
        half = -(-rows // 2)             # cdiv(rows, 2)
        half = -(-half // sub) * sub     # round up to the sublane multiple
        br = min(br, half)
    if rows <= br:
        # Single full-extent block (always a legal block shape).
        return rows
    return br


def _vmem_limit_bytes(block_rows, dim, dtype, ceiling):
    itemsize = jnp.dtype(dtype).itemsize
    limit = _bytes_needed(block_rows, dim, itemsize) + 4 * _MIB  # + headroom
    limit = max(limit, 16 * _MIB)
    limit = min(limit, ceiling)
    return int(limit)


def rmsnorm(x, weight, *, block_rows=None):
    """x: (..., dim); weight: (dim,). Returns same shape/dtype as x."""
    orig_shape = x.shape
    dim = orig_shape[-1]
    x2 = x.reshape(-1, dim)
    rows = x2.shape[0]

    ceiling, tile_target, is_v7x = _chip_config()
    if block_rows is None:
        block_rows = _pick_block_rows(
            rows, dim, x.dtype, tile_target, ceiling - 4 * _MIB, is_v7x
        )
    vmem_limit = _vmem_limit_bytes(block_rows, dim, x.dtype, ceiling)

    # Cast weight to f32 once here (no per-grid-step cast in the kernel).
    w2 = weight.astype(jnp.float32).reshape(1, dim)

    kernel = functools.partial(_rmsnorm_kernel, inv_dim=1.0 / float(dim))

    out = pl.pallas_call(
        kernel,
        out_shape=jax.ShapeDtypeStruct((rows, dim), x.dtype),
        grid_spec=pltpu.PrefetchScalarGridSpec(
            num_scalar_prefetch=0,
            grid=(pl.cdiv(rows, block_rows),),
            in_specs=[
                pl.BlockSpec((block_rows, dim), lambda i: (i, 0)),
                pl.BlockSpec((1, dim), lambda i: (0, 0)),  # weight stays resident
            ],
            out_specs=pl.BlockSpec((block_rows, dim), lambda i: (i, 0)),
        ),
        compiler_params=pltpu.CompilerParams(
            dimension_semantics=("parallel",),
            vmem_limit_bytes=vmem_limit,
        ),
    )(x2, w2)

    return out.reshape(orig_shape)


def rmsnorm_ref(x, weight):
    xf = x.astype(jnp.float32)
    inv = jax.lax.rsqrt(jnp.mean(xf * xf, axis=-1, keepdims=True) + EPS)
    return (xf * inv * weight.astype(jnp.float32)).astype(x.dtype)


def _make_weight(dim):
    # Module initializes to ones; perturb deterministically so the scale path
    # is actually exercised.
    return jnp.ones((dim,), jnp.float32) + 0.01 * jnp.arange(dim, dtype=jnp.float32)


if __name__ == "__main__":
    key = jax.random.PRNGKey(0)
    k1, k2, k3 = jax.random.split(key, 3)

    # Case 1: small shape consistent with the module (hidden=32, f32).
    x1 = jax.random.normal(k1, (2, 8, 32), dtype=jnp.float32)
    w1 = _make_weight(32)
    o1 = jax.block_until_ready(rmsnorm(x1, w1))
    r1 = rmsnorm_ref(x1, w1)
    assert o1.shape == x1.shape and o1.dtype == x1.dtype
    assert jnp.allclose(o1, r1, atol=1e-5, rtol=1e-5)

    # Case 2: lane-dense 128-multiple hidden dim, bf16 inputs.
    x2 = jax.random.normal(k2, (2, 8, 256), dtype=jnp.float32).astype(jnp.bfloat16)
    w2 = _make_weight(256)
    o2 = jax.block_until_ready(rmsnorm(x2, w2))
    r2 = rmsnorm_ref(x2, w2)
    assert o2.shape == x2.shape and o2.dtype == x2.dtype
    assert jnp.allclose(o2.astype(jnp.float32), r2.astype(jnp.float32),
                        atol=2e-2, rtol=2e-2)

    # Case 3: multi-step grid (explicit small block) with lane-dense output.
    x3 = jax.random.normal(k3, (4, 8, 128), dtype=jnp.float32)
    w3 = _make_weight(128)
    o3 = jax.block_until_ready(rmsnorm(x3, w3, block_rows=8))
    r3 = rmsnorm_ref(x3, w3)
    assert o3.shape == x3.shape and o3.dtype == x3.dtype
    assert jnp.allclose(o3, r3, atol=1e-5, rtol=1e-5)

    print("KERNEL_OK")
</pallas_src>

<mosaic_0001>
module attributes {stable_mosaic.version = 11 : i64} {
  func.func @_rmsnorm_kernel(%arg0: i32, %arg1: memref<16x32xf32, #tpu.memory_space<vmem>>, %arg2: memref<1x32xf32, #tpu.memory_space<vmem>>, %arg3: memref<16x32xf32, #tpu.memory_space<vmem>>) attributes {dimension_semantics = [#tpu.dimension_semantics<parallel>], iteration_bounds = array<i64: 1>, scalar_prefetch = 0 : i64, scratch_operands = 0 : i64, tpu.core_type = #tpu.core_type<tc>, window_params = [{transform_indices = @transform_0, window_bounds = array<i64: 16, 32>}, {pipeline_mode = #tpu.pipeline_mode<synchronous>, transform_indices = @transform_1, window_bounds = array<i64: 1, 32>}, {transform_indices = @transform_2, window_bounds = array<i64: 16, 32>}]} {
    %c0 = arith.constant 0 : index
    %c0_0 = arith.constant 0 : index
    %0 = vector.load %arg1[%c0, %c0_0] : memref<16x32xf32, #tpu.memory_space<vmem>>, vector<16x32xf32>
    %1 = arith.mulf %0, %0 : vector<16x32xf32>
    %cst = arith.constant dense<0.000000e+00> : vector<16xf32>
    %2 = vector.multi_reduction <add>, %1, %cst [1] : vector<16x32xf32> to vector<16xf32>
    %3 = vector.shape_cast %2 : vector<16xf32> to vector<16x1xf32>
    %cst_1 = arith.constant 3.125000e-02 : f32
    %4 = vector.broadcast %cst_1 : f32 to vector<16x1xf32>
    %5 = arith.mulf %3, %4 : vector<16x1xf32>
    %cst_2 = arith.constant 9.99999997E-7 : f32
    %6 = vector.broadcast %cst_2 : f32 to vector<16x1xf32>
    %7 = arith.addf %5, %6 : vector<16x1xf32>
    %8 = math.rsqrt %7 : vector<16x1xf32>
    %c0_3 = arith.constant 0 : index
    %c0_4 = arith.constant 0 : index
    %9 = vector.load %arg1[%c0_3, %c0_4] : memref<16x32xf32, #tpu.memory_space<vmem>>, vector<16x32xf32>
    %10 = vector.broadcast %8 : vector<16x1xf32> to vector<16x32xf32>
    %11 = arith.mulf %9, %10 : vector<16x32xf32>
    %c0_5 = arith.constant 0 : index
    %c0_6 = arith.constant 0 : index
    %12 = vector.load %arg2[%c0_5, %c0_6] : memref<1x32xf32, #tpu.memory_space<vmem>>, vector<1x32xf32>
    %13 = vector.broadcast %12 : vector<1x32xf32> to vector<16x32xf32>
    %14 = arith.mulf %11, %13 : vector<16x32xf32>
    %c0_7 = arith.constant 0 : index
    %c0_8 = arith.constant 0 : index
    %15 = vector.load %arg3[%c0_7, %c0_8] : memref<16x32xf32, #tpu.memory_space<vmem>>, vector<16x32xf32>
    tpu.vector_store %arg3[%c0_7, %c0_8], %14 {strides = array<i32>} : memref<16x32xf32, #tpu.memory_space<vmem>>, vector<16x32xf32>,
    return
  }
  func.func @transform_0(%arg0: i32) -> (i32, i32) {
    %c0_i32 = arith.constant 0 : i32
    %c0_i32_0 = arith.constant 0 : i32
    return %arg0, %c0_i32 : i32, i32
  }
  func.func @transform_1(%arg0: i32) -> (i32, i32) {
    %c0_i32 = arith.constant 0 : i32
    %c0_i32_0 = arith.constant 0 : i32
    %c0_i32_1 = arith.constant 0 : i32
    return %c0_i32, %c0_i32_0 : i32, i32
  }
  func.func @transform_2(%arg0: i32) -> (i32, i32) {
    %c0_i32 = arith.constant 0 : i32
    %c0_i32_0 = arith.constant 0 : i32
    return %arg0, %c0_i32 : i32, i32
  }
}

</mosaic_0001>

<llo_original>
// kernel: tpu_custom_call.1
$region0: #{tpu_custom_call.1}
  #allocation0 [shape = 'u32[]', space=smem, size = 0x4, offset = 0x4, fixed_abs, tag = 'smem constant byte address 0x4 - core index']
  #allocation1 [shape = 'u32[144,128]{1,0:T(1,128)}', space=vmem, size = 0x12000, scoped, tag = 'internal scratch']
  %s0 = inlined_call_operand.hbm [shape: f32[16,32], index: 0, kind: input, shape index: {}]
  %s1 = inlined_call_operand.vmem [shape: f32[1,32], index: 1, kind: input, shape index: {}]
  %s2 = inlined_call_operand.hbm [shape: f32[16,32], index: 2, kind: output, shape index: {}]
  %s3 = sld [smem:[#allocation0]]
  $region22: #{tpu_custom_call.1} parent=0
    _
  %s5 = ssub.s32 1, %s3
  %s6 = scalar_select 0, %s5, %s3
  $region1: #{tpu_custom_call.1} parent=0
    #allocation2 [shape = 'u8[8192]{0}', space=vmem, size = 0x2000, scoped, tag = 'input window, operand 0, single buffered']
    #allocation3 [shape = 's32[1]{0}', space=sflag, size = 0x4, scoped, tag = 'scoped memory for tpu_custom_call.1']
    #allocation4 [shape = 's32[1]{0}', space=sflag, size = 0x4, scoped, tag = 'scoped memory for tpu_custom_call.1']
    #allocation5 [shape = 'u8[8192]{0}', space=vmem, size = 0x2000, scoped, tag = 'output window, operand 0, single buffered']
    %7 = vsyncpa [#allocation3], 0
    %8 = vsyncpa [#allocation4], 0
    // Predicated region
    $region2: #{tpu_custom_call.1} parent=1 // pred_check
      _
    $region3: #{tpu_custom_call.1} parent=1 // pred_check_branch
      %10 = sbr.rel (0) target = $region5
    $region4: #{tpu_custom_call.1} parent=1 // pred_region
      %s12 = ssub.s32 256, 256
      %13 = vsyncadd [#allocation3], %s12
      %s14 = sshll.u32 [#allocation2], 4
      %s15 = int_to_ptr.vmem [resolvable:$true] %s14
      %20 = dma.hbm_to_vmem [thread:$0]  %s0, 256, %s15, [#allocation3], 128, 128, 8
    $region5: #{tpu_custom_call.1} parent=1 // pred_fallthru
      _
    // Predicated region
    $region6: #{tpu_custom_call.1} parent=1 // pred_check
      _
    $region7: #{tpu_custom_call.1} parent=1 // pred_check_branch
      %22 = sbr.rel (0) target = $region9
    $region8: #{tpu_custom_call.1} parent=1 // pred_region
      _
    $region9: #{tpu_custom_call.1} parent=1 // pred_fallthru
      _
    // Predicated region
    $region10: #{tpu_custom_call.1} parent=1 // pred_check
      _
    $region11: #{tpu_custom_call.1} parent=1 // pred_check_branch
      %24 = sbr.rel (0) target = $region13
    $region12: #{tpu_custom_call.1} parent=1 // pred_region
      %25 = dma.done [#allocation3], 256
    $region13: #{tpu_custom_call.1} parent=1 // pred_fallthru
      _
    %v26 = vld [vmem:[#allocation2] sm:$0xff]
    %v27 = vld [vmem:[#allocation2 + $0x8] sm:$0xff]
    %v28 = vmul.f32 %v26, %v26
    %v29 = vmul.f32 %v27, %v27
    %vm30 = vcmask 261120
    %v31 = vsel %vm30, %v28, 0.0
    %32 = vadd.xlane.f32.xlu0 %v31
    %v33 = vpop.xlane.xlu0 %32
    %v34 = vsel %vm30, %v29, 0.0
    %35 = vadd.xlane.f32.xlu0 %v34
    %v36 = vpop.xlane.xlu0 %35
    %v37 = vmul.f32 %v33, 0.03125
    %v38 = vmul.f32 %v36, 0.03125
    %v39 = vadd.f32 %v37, 1e-06
    %v40 = vadd.f32 %v38, 1e-06
    %v41 = vrsqrt.pop %v39
    %v42 = vrsqrt.pop %v40
    %v43 = vmul.f32 %v26, %v41
    %v44 = vmul.f32 %v27, %v42
    %v45 = vld [vmem:[%s1] sm:$0x1]
    %v47 = vlaneseq
    %v48 = vshrl.u32 %v47, 7
    %v49 = vsub.s32 0, %v48
    %v50 = vrot.slane %v45, %v49
    %v52 = vmul.f32 %v43, %v50
    %v53 = vmul.f32 %v44, %v50
    %54 = vst.msk [vmem:[#allocation5] sm:$0xff] %vm30, %v52
    %55 = vst.msk [vmem:[#allocation5 + $0x8] sm:$0xff] %vm30, %v53
    // Predicated region
    $region14: #{tpu_custom_call.1} parent=1 // pred_check
      _
    $region15: #{tpu_custom_call.1} parent=1 // pred_check_branch
      %57 = sbr.rel (0) target = $region17
    $region16: #{tpu_custom_call.1} parent=1 // pred_region
      %s59 = ssub.s32 256, 256
      %60 = vsyncadd [#allocation4], %s59
      %s61 = sshll.u32 [#allocation5], 4
      %s62 = int_to_ptr.vmem [resolvable:$true] %s61
      %67 = dma.vmem_to_hbm [thread:$0]  %s62, 256, %s2, [#allocation4], 128, 128, 8
    $region17: #{tpu_custom_call.1} parent=1 // pred_fallthru
      _
    // Predicated region
    $region18: #{tpu_custom_call.1} parent=1 // pred_check
      _
    $region19: #{tpu_custom_call.1} parent=1 // pred_check_branch
      %69 = sbr.rel (0) target = $region21
    $region20: #{tpu_custom_call.1} parent=1 // pred_region
      %70 = dma.done [#allocation4], 256
    $region21: #{tpu_custom_call.1} parent=1 // pred_fallthru
      _
    %71 = vsyncpa [#allocation3], 1
    %72 = vsyncpa [#allocation4], 1

</llo_original>
